<compile_context>
chip_gen: v7x
topology: tpu7x:2x2x1
jax: 0.10.0
libtpu: 0.0.40
codegen_flags: <defaults>
</compile_context>

<pallas_src>
import jax
import jax.numpy as jnp
from jax import lax
from jax.experimental import pallas as pl
from jax.experimental.pallas import tpu as pltpu

_LANE = 128
_CORE_SPLIT = 2  # leading "parallel" grid axis (uses both TensorCores on v7x)


def _make_bce_sum_kernel(tile_rows, total_rows, blocks_per_core, needs_mask):
    def kernel(t_ref, x_ref, o_ref, acc_ref):
        c = pl.program_id(0)   # core-split ("parallel") axis
        i = pl.program_id(1)   # streaming ("arbitrary") reduction axis

        @pl.when(i == 0)
        def _():
            acc_ref[...] = jnp.zeros_like(acc_ref)

        # Load the native-dtype tile; upcast in-kernel (halves HBM bytes for bf16).
        z = x_ref[...].astype(jnp.float32)
        t = t_ref[0]
        # Stable BCE-with-logits: max(z,0) - z*t + log(1 + exp(-|z|))
        bce = jnp.maximum(z, 0.0) - z * t + jnp.log(1.0 + jnp.exp(-jnp.abs(z)))

        if needs_mask:
            # Zero out rows past the true row count (covers the partial last
            # tile and the clamped/duplicated tiles of the core split).
            blk = c * blocks_per_core + i          # logical (unclamped) block id
            row = blk * tile_rows + lax.broadcasted_iota(
                jnp.int32, (tile_rows, _LANE), 0)
            bce = jnp.where(row < total_rows, bce, 0.0)

        # Lane/sublane-parallel accumulation: pure VPU adds every step.
        acc_ref[...] += bce.reshape(tile_rows // 8, 8, _LANE).sum(axis=0)

        @pl.when(i == pl.num_programs(1) - 1)
        def _():
            o_ref[...] = acc_ref[...]

    return kernel


def _bce_with_logits_sum(x, t_arr, tile_rows):
    """sum_{all elements} BCE_with_logits(x, t) using a Pallas TPU kernel."""
    n = x.size
    x_flat = jnp.ravel(x)
    total = jnp.float32(0.0)

    rows = n // _LANE
    handled = 0
    if rows >= 8:
        main = rows * _LANE
        tr = min(max(8, (tile_rows // 8) * 8), (rows // 8) * 8)
        nb = -(-rows // tr)              # cdiv: number of row blocks
        spc = -(-nb // _CORE_SPLIT)      # blocks per core
        needs_mask = (_CORE_SPLIT * spc * tr) != rows

        # Free reshape when n is lane-aligned; otherwise slice off the tiny tail.
        x2 = (x_flat if main == n else x_flat[:main]).reshape(rows, _LANE)

        kernel = _make_bce_sum_kernel(tr, rows, spc, needs_mask)
        partial = pl.pallas_call(
            kernel,
            out_shape=jax.ShapeDtypeStruct((_CORE_SPLIT * 8, _LANE), jnp.float32),
            grid=(_CORE_SPLIT, spc),
            in_specs=[
                pl.BlockSpec(memory_space=pltpu.MemorySpace.SMEM),  # target label
                pl.BlockSpec(
                    (tr, _LANE),
                    lambda c, i: (jnp.minimum(c * spc + i, nb - 1), 0),
                ),
            ],
            out_specs=pl.BlockSpec((8, _LANE), lambda c, i: (c, 0)),
            scratch_shapes=[pltpu.VMEM((8, _LANE), jnp.float32)],
            compiler_params=pltpu.CompilerParams(
                dimension_semantics=("parallel", "arbitrary"),
            ),
        )(t_arr, x2)
        total = total + jnp.sum(partial)
        handled = main

    if handled < n:
        # Non-lane-aligned remainder (< 128 elems, or whole tiny input): plain JAX.
        z = x_flat[handled:].astype(jnp.float32)
        t = t_arr[0]
        total = total + jnp.sum(
            jnp.maximum(z, 0.0) - z * t + jnp.log(1.0 + jnp.exp(-jnp.abs(z))))
    return total


def softmax_loss(x, target_label, *, tile_rows=1024):
    """Pallas TPU equivalent of SoftmaxLoss.forward(x, target_label)."""
    t_arr = jnp.asarray(target_label, dtype=jnp.float32).reshape((1,))
    if isinstance(x, (list, tuple)):
        # `for output in x` over a python list of tensors.
        total = jnp.float32(0.0)
        for out in x:
            total = total + _bce_with_logits_sum(out, t_arr, tile_rows) / float(out.size)
        return total
    # `for output in x` iterates the leading axis: sum of per-slice means.
    per_slice = x.size // x.shape[0]
    return _bce_with_logits_sum(x, t_arr, tile_rows) / float(per_slice)


def _reference_loss(x, target_label):
    """Plain-JAX reference matching torch SoftmaxLoss semantics."""
    z = x.astype(jnp.float32)
    t = jnp.float32(target_label)
    bce = jnp.maximum(z, 0.0) - z * t + jnp.log1p(jnp.exp(-jnp.abs(z)))
    return jnp.sum(jnp.mean(bce.reshape(x.shape[0], -1), axis=1))


if __name__ == "__main__":
    key = jax.random.PRNGKey(0)
    k1, k2 = jax.random.split(key)

    # Discriminator-style logits, NCHW.
    x = jax.random.normal(k1, (2, 4, 16, 16), dtype=jnp.float32)

    loss_real = softmax_loss(x, 1.0)
    loss_fake = softmax_loss(x, 0.0)
    jax.block_until_ready((loss_real, loss_fake))

    assert jnp.allclose(loss_real, _reference_loss(x, 1.0), rtol=1e-4, atol=1e-4), (
        loss_real, _reference_loss(x, 1.0))
    assert jnp.allclose(loss_fake, _reference_loss(x, 0.0), rtol=1e-4, atol=1e-4), (
        loss_fake, _reference_loss(x, 0.0))

    # Native bf16 path (in-kernel upcast).
    xb = x.astype(jnp.bfloat16)
    assert jnp.allclose(softmax_loss(xb, 1.0), _reference_loss(xb, 1.0),
                        rtol=1e-4, atol=1e-4)

    # Ragged shape: exercises cdiv grid + in-kernel masking + plain-JAX tail.
    xr = jax.random.normal(k2, (2, 5, 9, 16), dtype=jnp.float32)
    lr = softmax_loss(xr, 1.0)
    jax.block_until_ready(lr)
    assert jnp.allclose(lr, _reference_loss(xr, 1.0), rtol=1e-4, atol=1e-4), (
        lr, _reference_loss(xr, 1.0))

    print("KERNEL_OK")
</pallas_src>

<mosaic_0001>
module attributes {stable_mosaic.version = 11 : i64} {
  func.func @kernel(%arg0: i32, %arg1: i32, %arg2: memref<1xf32, #tpu.memory_space<smem>>, %arg3: memref<16x128xf32, #tpu.memory_space<vmem>>, %arg4: memref<8x128xf32, #tpu.memory_space<vmem>>, %arg5: memref<8x128xf32, #tpu.memory_space<vmem>>) attributes {dimension_semantics = [#tpu.dimension_semantics<parallel>, #tpu.dimension_semantics<arbitrary>], iteration_bounds = array<i64: 2, 1>, scalar_prefetch = 0 : i64, scratch_operands = 1 : i64, tpu.core_type = #tpu.core_type<tc>, window_params = [{transform_indices = @transform_0, window_bounds = array<i64: 1>}, {transform_indices = @transform_1, window_bounds = array<i64: 16, 128>}, {transform_indices = @transform_2, window_bounds = array<i64: 8, 128>}]} {
    %c0_i32 = arith.constant 0 : i32
    %0 = arith.cmpi eq, %arg1, %c0_i32 : i32
    %1 = arith.extui %0 : i1 to i32
    %c0_i32_0 = arith.constant 0 : i32
    %2 = arith.cmpi ne, %1, %c0_i32_0 : i32
    scf.if %2 {
      %cst_14 = arith.constant 0.000000e+00 : f32
      %36 = vector.broadcast %cst_14 : f32 to vector<8x128xf32>
      %c0_15 = arith.constant 0 : index
      %c0_16 = arith.constant 0 : index
      %37 = vector.load %arg5[%c0_15, %c0_16] : memref<8x128xf32, #tpu.memory_space<vmem>>, vector<8x128xf32>
      tpu.vector_store %arg5[%c0_15, %c0_16], %36 {strides = array<i32>} : memref<8x128xf32, #tpu.memory_space<vmem>>, vector<8x128xf32>,
    } else {
    }
    %c0 = arith.constant 0 : index
    %c0_1 = arith.constant 0 : index
    %3 = vector.load %arg3[%c0, %c0_1] : memref<16x128xf32, #tpu.memory_space<vmem>>, vector<16x128xf32>
    %c0_2 = arith.constant 0 : index
    %4 = memref.load %arg2[%c0_2] : memref<1xf32, #tpu.memory_space<smem>>
    %cst = arith.constant 0.000000e+00 : f32
    %5 = vector.broadcast %cst : f32 to vector<16x128xf32>
    %6 = arith.maximumf %3, %5 : vector<16x128xf32>
    %7 = vector.broadcast %4 : f32 to vector<16x128xf32>
    %8 = arith.mulf %3, %7 : vector<16x128xf32>
    %9 = arith.subf %6, %8 : vector<16x128xf32>
    %10 = math.absf %3 : vector<16x128xf32>
    %cst_3 = arith.constant 0.000000e+00 : f32
    %11 = vector.broadcast %cst_3 : f32 to vector<16x128xf32>
    %12 = arith.subf %11, %10 : vector<16x128xf32>
    %13 = math.exp %12 : vector<16x128xf32>
    %cst_4 = arith.constant 1.000000e+00 : f32
    %14 = vector.broadcast %cst_4 : f32 to vector<16x128xf32>
    %15 = arith.addf %14, %13 : vector<16x128xf32>
    %16 = math.log %15 : vector<16x128xf32>
    %17 = arith.addf %9, %16 : vector<16x128xf32>
    %c1_i32 = arith.constant 1 : i32
    %18 = arith.muli %arg0, %c1_i32 : i32
    %19 = arith.addi %18, %arg1 : i32
    %c16_i32 = arith.constant 16 : i32
    %20 = arith.muli %19, %c16_i32 : i32
    %21 = tpu.iota {dimensions = array<i32: 0>} : vector<16x128xi32>
    %22 = vector.broadcast %20 : i32 to vector<16x128xi32>
    %23 = arith.addi %22, %21 : vector<16x128xi32>
    %c16_i32_5 = arith.constant 16 : i32
    %24 = vector.broadcast %c16_i32_5 : i32 to vector<16x128xi32>
    %25 = arith.cmpi slt, %23, %24 : vector<16x128xi32>
    %cst_6 = arith.constant 0.000000e+00 : f32
    %26 = vector.broadcast %cst_6 : f32 to vector<16x128xf32>
    %27 = arith.select %25, %17, %26 : vector<16x128xi1>, vector<16x128xf32>
    %c0_7 = arith.constant 0 : index
    %c0_8 = arith.constant 0 : index
    %28 = vector.load %arg5[%c0_7, %c0_8] : memref<8x128xf32, #tpu.memory_space<vmem>>, vector<8x128xf32>
    %29 = vector.shape_cast %27 : vector<16x128xf32> to vector<2x8x128xf32>
    %cst_9 = arith.constant dense<0.000000e+00> : vector<8x128xf32>
    %30 = vector.multi_reduction <add>, %29, %cst_9 [0] : vector<2x8x128xf32> to vector<8x128xf32>
    %31 = arith.addf %28, %30 : vector<8x128xf32>
    %c0_10 = arith.constant 0 : index
    %c0_11 = arith.constant 0 : index
    %32 = vector.load %arg5[%c0_10, %c0_11] : memref<8x128xf32, #tpu.memory_space<vmem>>, vector<8x128xf32>
    tpu.vector_store %arg5[%c0_10, %c0_11], %31 {strides = array<i32>} : memref<8x128xf32, #tpu.memory_space<vmem>>, vector<8x128xf32>,
    %c0_i32_12 = arith.constant 0 : i32
    %33 = arith.cmpi eq, %arg1, %c0_i32_12 : i32
    %34 = arith.extui %33 : i1 to i32
    %c0_i32_13 = arith.constant 0 : i32
    %35 = arith.cmpi ne, %34, %c0_i32_13 : i32
    scf.if %35 {
      %c0_14 = arith.constant 0 : index
      %c0_15 = arith.constant 0 : index
      %36 = vector.load %arg5[%c0_14, %c0_15] : memref<8x128xf32, #tpu.memory_space<vmem>>, vector<8x128xf32>
      %c0_16 = arith.constant 0 : index
      %c0_17 = arith.constant 0 : index
      %37 = vector.load %arg4[%c0_16, %c0_17] : memref<8x128xf32, #tpu.memory_space<vmem>>, vector<8x128xf32>
      tpu.vector_store %arg4[%c0_16, %c0_17], %36 {strides = array<i32>} : memref<8x128xf32, #tpu.memory_space<vmem>>, vector<8x128xf32>,
    } else {
    }
    return
  }
  func.func @transform_0(%arg0: i32, %arg1: i32) -> i32 {
    %c0_i32 = arith.constant 0 : i32
    %c0_i32_0 = arith.constant 0 : i32
    return %c0_i32 : i32
  }
  func.func @transform_1(%arg0: i32, %arg1: i32) -> (i32, i32) {
    %c1_i32 = arith.constant 1 : i32
    %0 = arith.muli %arg0, %c1_i32 : i32
    %1 = arith.addi %0, %arg1 : i32
    %c0_i32 = arith.constant 0 : i32
    %2 = arith.minsi %1, %c0_i32 : i32
    %c0_i32_0 = arith.constant 0 : i32
    %c0_i32_1 = arith.constant 0 : i32
    return %2, %c0_i32_0 : i32, i32
  }
  func.func @transform_2(%arg0: i32, %arg1: i32) -> (i32, i32) {
    %c0_i32 = arith.constant 0 : i32
    %c0_i32_0 = arith.constant 0 : i32
    return %arg0, %c0_i32 : i32, i32
  }
}

</mosaic_0001>

<llo_original>
// kernel: tpu_custom_call.1
$region0: #{tpu_custom_call.1}
  #allocation0 [shape = 'u32[]', space=smem, size = 0x4, offset = 0x4, fixed_abs, tag = 'smem constant byte address 0x4 - core index']
  #allocation1 [shape = 'u32[144,128]{1,0:T(1,128)}', space=vmem, size = 0x12000, scoped, tag = 'internal scratch']
  #allocation2 [shape = 'f32[8,128]{1,0:T(8,128)}', space=vmem, size = 0x1000, scoped, tag = 'scratch operand']
  #allocation3 [shape = 'f32[1]{0:T(128)S(6)}', space=smem, size = 0x200, scoped, tag = 'scoped memory for tpu_custom_call.1']
  %s0 = inlined_call_operand.<no memory space> [shape: f32[1], index: 0, kind: input, shape index: {}]
  %s1 = inlined_call_operand.hbm [shape: f32[16,128], index: 1, kind: input, shape index: {}]
  %s2 = inlined_call_operand.hbm [shape: f32[16,128], index: 2, kind: output, shape index: {}]
  %s3 = sld [smem:[#allocation0]]
  $region53: #{tpu_custom_call.1} parent=0
    _
  %s5 = ssub.s32 1, %s3
  %s6 = scalar_select 0, %s5, %s3
  %7 = sst [smem:[#allocation3]] %s0
  $region1: #{tpu_custom_call.1} parent=0
    #allocation4 [shape = 'u8[16384]{0}', space=vmem, size = 0x4000, scoped, tag = 'input window, operand 1']
    #allocation5 [shape = 's32[2]{0}', space=sflag, size = 0x8, scoped, tag = 'scoped memory for tpu_custom_call.1']
    #allocation6 [shape = 's32[2]{0}', space=sflag, size = 0x8, scoped, tag = 'scoped memory for tpu_custom_call.1']
    #allocation7 [shape = 'u8[8192]{0}', space=vmem, size = 0x2000, scoped, tag = 'output window, operand 0']
    %8 = vsyncpa [#allocation5], 0
    %s9 = scalar_lea.sflag [#allocation5], 1
    %10 = vsyncpa %s9, 0
    %11 = vsyncpa [#allocation6], 0
    %s12 = scalar_lea.sflag [#allocation6], 1
    %13 = vsyncpa %s12, 0
    loop: start=0, step=1, limit=4
    $region2: #{tpu_custom_call.1} parent=1 // loop_pre_header
      _
    $region3: #{tpu_custom_call.1} parent=1 // loop_header
      %s15 = sphi 0, %s19
      %p16 = scmp.ge.s32.totalorder %s15, 4
      %s22 = sphi 0, %s34
      %s23 = sphi 0, %s30
      %s24 = sphi 0, %s22
      %s25 = sphi 0, %s23
      %s26 = sphi 0, %s24
      %s27 = sphi 0, %s25
      %s35 = sphi 0, %s35
      %s37 = sphi 0, %s35
      %s38 = sphi 0, %s37
      %s52 = sphi 0, %s38
      %s64 = sphi 0, %s66
      %s67 = sphi 0, %s64
      %s68 = sphi 0, %s67
      %s84 = sphi 0, %s68
      %s90 = sphi 0, %s92
      %s93 = sphi 0, %s90
      %s94 = sphi 0, %s93
      %s110 = sphi 0, %s94
    $region4: #{tpu_custom_call.1} parent=1 // loop_header_branch
      %18 = sbr.rel (%p16) target = $region8
    $region5: #{tpu_custom_call.1} parent=1 // loop_body
      %s20 = ssub.s32 %s15, 1
      %s21 = ssub.s32 %s15, 2
      %s28 = sadd.s32 1, %s23
      %p29 = scmp.ge.s32.totalorder %s28, 1
      %s30 = scalar_select %p29, 0, %s28
      %s31 = sadd.s32 1, %s22
      %s32 = scalar_select %p29, %s31, %s22
      %p33 = scmp.ge.s32.totalorder %s32, 2
      %s34 = scalar_select %p33, 0, %s32
      %s36 = sadd.s32 %s35, 1
      %p39 = scmp.eq.s32.totalorder %s15, 1
      %p40 = scmp.ne.s32.totalorder %s35, %s37
      %p41 = scmp.eq.s32.totalorder %s15, 0
      %p42 = por %p40, %p41
      %p43 = scmp.ne.s32.totalorder %s35, %s37
      %p44 = scmp.eq.s32.totalorder %s20, 1
      %p45 = por %p43, %p44
      %p46 = scmp.ne.s32.totalorder %s37, %s38
      %p47 = scmp.eq.s32.totalorder %s20, 0
      %p48 = por %p46, %p47
      %p49 = scmp.ne.s32.totalorder %s37, %s38
      %p50 = scmp.eq.s32.totalorder %s21, 1
      %p51 = por %p49, %p50
      %p53 = scmp.ne.s32.totalorder %s38, %s52
      %p54 = scmp.eq.s32.totalorder %s21, 0
      %p55 = por %p53, %p54
      %s56 = sadd.s32 %s22, %s23
      %p57 = scmp.lt.s32.totalorder %s56, 0
      %s58 = scalar_select %p57, %s56, 0
      %s59 = sadd.s32 %s34, %s30
      %p60 = scmp.lt.s32.totalorder %s59, 0
      %s61 = scalar_select %p60, %s59, 0
      %s62 = ssub.s32 %s58, %s61
      %p63 = scmp.eq.s32.totalorder %s62, 0
      %s65 = sadd.s32 %s64, 1
      %s66 = scalar_select %p63, %s64, %s65
      %p69 = pneg %p63
      %p70 = scmp.eq.s32.totalorder %s15, 1
      %p71 = por %p69, %p70
      %p72 = scmp.ne.s32.totalorder %s64, %s67
      %p73 = scmp.eq.s32.totalorder %s15, 0
      %p74 = por %p72, %p73
      %p75 = scmp.ne.s32.totalorder %s64, %s67
      %p76 = scmp.eq.s32.totalorder %s20, 1
      %p77 = por %p75, %p76
      %p78 = scmp.ne.s32.totalorder %s67, %s68
      %p79 = scmp.eq.s32.totalorder %s20, 0
      %p80 = por %p78, %p79
      %p81 = scmp.ne.s32.totalorder %s67, %s68
      %p82 = scmp.eq.s32.totalorder %s21, 1
      %p83 = por %p81, %p82
      %p85 = scmp.ne.s32.totalorder %s68, %s84
      %p86 = scmp.eq.s32.totalorder %s21, 0
      %p87 = por %p85, %p86
      %s88 = ssub.s32 %s22, %s34
      %p89 = scmp.eq.s32.totalorder %s88, 0
      %s91 = sadd.s32 %s90, 1
      %s92 = scalar_select %p89, %s90, %s91
      %p95 = pneg %p89
      %p96 = scmp.eq.s32.totalorder %s15, 1
      %p97 = por %p95, %p96
      %p98 = scmp.ne.s32.totalorder %s90, %s93
      %p99 = scmp.eq.s32.totalorder %s15, 0
      %p100 = por %p98, %p99
      %p101 = scmp.ne.s32.totalorder %s90, %s93
      %p102 = scmp.eq.s32.totalorder %s20, 1
      %p103 = por %p101, %p102
      %p104 = scmp.ne.s32.totalorder %s93, %s94
      %p105 = scmp.eq.s32.totalorder %s20, 0
      %p106 = por %p104, %p105
      %p107 = scmp.ne.s32.totalorder %s93, %s94
      %p108 = scmp.eq.s32.totalorder %s21, 1
      %p109 = por %p107, %p108
      %p111 = scmp.ne.s32.totalorder %s94, %s110
      %p112 = scmp.eq.s32.totalorder %s21, 0
      %p113 = por %p111, %p112
      %p114 = scmp.le.s32.totalorder 1, %s15
      %p115 = scmp.lt.s32.totalorder %s15, 3
      %p116 = pnand %p114, %p115
      %p117 = pneg %p116
      // Predicated region
      $region9: #{tpu_custom_call.1} parent=5 // pred_check
        _
      $region10: #{tpu_custom_call.1} parent=5 // pred_check_branch
        %119 = sbr.rel (%p116) target = $region12
      $region11: #{tpu_custom_call.1} parent=5 // pred_region
        %s120 = ssub.s32 %s15, 1
        // Predicated region
        $region13: #{tpu_custom_call.1} parent=11 // pred_check
          %p121 = pneg %p48
        $region14: #{tpu_custom_call.1} parent=11 // pred_check_branch
          %123 = sbr.rel (%p121) target = $region16
        $region15: #{tpu_custom_call.1} parent=11 // pred_region
          _
        $region16: #{tpu_custom_call.1} parent=11 // pred_fallthru
          _
      $region12: #{tpu_custom_call.1} parent=5 // pred_fallthru
        _
      %p124 = scmp.lt.s32.totalorder %s15, 2
      // Predicated region
      $region17: #{tpu_custom_call.1} parent=5 // pred_check
        %p125 = pneg %p124
      $region18: #{tpu_custom_call.1} parent=5 // pred_check_branch
        %127 = sbr.rel (%p125) target = $region20
      $region19: #{tpu_custom_call.1} parent=5 // pred_region
        // Predicated region
        $region21: #{tpu_custom_call.1} parent=19 // pred_check
          %p128 = pneg %p74
        $region22: #{tpu_custom_call.1} parent=19 // pred_check_branch
          %130 = sbr.rel (%p128) target = $region24
        $region23: #{tpu_custom_call.1} parent=19 // pred_region
          %s131 = sand.u32 %s64, 1
          %s132 = scalar_lea.sflag [#allocation5], %s131
          %s133 = sand.u32 %s64, 1
          %s134 = smul.addr %s133, 16
          %s135 = scalar_lea.vmem [#allocation4], %s134
          %s136 = sadd.s32 %s22, %s23
          %p137 = scmp.lt.s32.totalorder %s136, 0
          %s138 = scalar_select %p137, %s136, 0
          %s139 = smul.u32 2, %s138
          %s141 = ssub.s32 256, 256
          %142 = vsyncadd %s132, %s141
          %s143 = smul.addr %s139, 128
          %s144 = scalar_lea.hbm %s1, %s143
          %s145 = sshll.u32 %s135, 4
          %s146 = int_to_ptr.vmem [resolvable:$true] %s145
          %151 = dma.hbm_to_vmem [thread:$0]  %s144, 256, %s146, %s132, 128, 128, 8
        $region24: #{tpu_custom_call.1} parent=19 // pred_fallthru
          _
      $region20: #{tpu_custom_call.1} parent=5 // pred_fallthru
        _
      %p152 = scmp.le.s32.totalorder 1, %s15
      %p153 = scmp.lt.s32.totalorder %s15, 3
      %p154 = pnand %p152, %p153
      %p155 = pneg %p154
      // Predicated region
      $region25: #{tpu_custom_call.1} parent=5 // pred_check
        _
      $region26: #{tpu_custom_call.1} parent=5 // pred_check_branch
        %157 = sbr.rel (%p154) target = $region28
      $region27: #{tpu_custom_call.1} parent=5 // pred_region
        %s158 = ssub.s32 %s15, 1
        %s159 = sand.u32 %s67, 1
        %s160 = scalar_lea.sflag [#allocation5], %s159
        %s161 = sand.u32 %s67, 1
        %s162 = smul.addr %s161, 16
        %s163 = scalar_lea.vmem [#allocation4], %s162
        // Predicated region
        $region29: #{tpu_custom_call.1} parent=27 // pred_check
          %p164 = pneg %p80
        $region30: #{tpu_custom_call.1} parent=27 // pred_check_branch
          %166 = sbr.rel (%p164) target = $region32
        $region31: #{tpu_custom_call.1} parent=27 // pred_region
          %167 = dma.done %s160, 256
        $region32: #{tpu_custom_call.1} parent=27 // pred_fallthru
          _
        %p168 = pneg %p48
        %p169 = pneg %p45
        %s170 = sand.u32 %s67, 1
        %s171 = scalar_lea.sflag [#allocation5], %s170
        %s172 = sand.u32 %s67, 1
        %s173 = smul.addr %s172, 16
        %s174 = scalar_lea.vmem [#allocation4], %s173
        %p175 = pneg %p80
        %p176 = pneg %p77
        %p177 = pneg %p106
        %p178 = pneg %p103
        %s179 = sand.u32 %s93, 1
        %s180 = scalar_lea.sflag [#allocation6], %s179
        %s181 = sand.u32 %s93, 1
        %s182 = smul.addr %s181, 8
        %s183 = scalar_lea.vmem [#allocation7], %s182
        %s184 = sadd.s32 %s24, %s25
        %p185 = scmp.lt.s32.totalorder %s184, 0
        %s186 = scalar_select %p185, %s184, 0
        %s187 = smul.u32 2, %s186
        %p188 = scmp.eq.s32.totalorder %s25, 0
        // Predicated region
        $region33: #{tpu_custom_call.1} parent=27 // pred_check
          %p189 = pneg %p188
        $region34: #{tpu_custom_call.1} parent=27 // pred_check_branch
          %191 = sbr.rel (%p189) target = $region36
        $region35: #{tpu_custom_call.1} parent=27 // pred_region
          %192 = vst [vmem:[#allocation2] sm:$0xff] 0.0
        $region36: #{tpu_custom_call.1} parent=27 // pred_fallthru
          _
        %v193 = vld [vmem:[%s163] sm:$0xff]
        %v194 = vld [vmem:[%s163 + $0x8] sm:$0xff]
        %s195 = sld [smem:[#allocation3]]
        %v196 = vmax.f32 %v193, 0.0
        %v197 = vmax.f32 %v194, 0.0
        %v198 = vstv %s195
        %v199 = vmul.f32 %v193, %v198
        %v200 = vmul.f32 %v194, %v198
        %v201 = vsub.f32 %v196, %v199
        %v202 = vsub.f32 %v197, %v200
        %v203 = vand.u32 2147483647, %v193
        %v204 = vand.u32 2147483647, %v194
        %v205 = vsub.f32 0.0, %v203
        %v206 = vsub.f32 0.0, %v204
        %v207 = vmul.f32 %v205, 1.442695
        %v208 = vpow.pop %v207
        %v209 = vmul.f32 %v206, 1.442695
        %v210 = vpow.pop %v209
        %v211 = vadd.f32 %v208, 1.0
        %v212 = vadd.f32 %v210, 1.0
        %v213 = vlog2.pop %v211
        %v214 = vmul.f32 %v213, 0.6931472
        %v215 = vlog2.pop %v212
        %v216 = vmul.f32 %v215, 0.6931472
        %v217 = vadd.f32 %v201, %v214
        %v218 = vadd.f32 %v202, %v216
        %s219 = sadd.s32 %s24, %s25
        %s220 = smul.u32 %s219, 16
        %v221 = vlaneseq
        %v222 = vshrl.u32 %v221, 7
        %v223 = vadd.s32 %v222, 8
        %v224 = vstv %s220
        %v225 = vadd.s32 %v224, %v222
        %v226 = vadd.s32 %v224, %v223
        %vm227 = vcmp.lt.s32.totalorder %v225, 16
        %vm228 = vcmp.lt.s32.totalorder %v226, 16
        %v229 = vsel %vm227, %v217, 0.0
        %v230 = vsel %vm228, %v218, 0.0
        %v231 = vld [vmem:[#allocation2] sm:$0xff]
        %v232 = vadd.f32 %v229, %v230
        %v233 = vadd.f32 %v231, %v232
        %234 = vst [vmem:[#allocation2] sm:$0xff] %v233
        // Predicated region
        $region37: #{tpu_custom_call.1} parent=27 // pred_check
          %p235 = pneg %p188
        $region38: #{tpu_custom_call.1} parent=27 // pred_check_branch
          %237 = sbr.rel (%p235) target = $region40
        $region39: #{tpu_custom_call.1} parent=27 // pred_region
          %v238 = vld [vmem:[#allocation2] sm:$0xff]
          %239 = vst [vmem:[%s183] sm:$0xff] %v238
        $region40: #{tpu_custom_call.1} parent=27 // pred_fallthru
          _
        %s240 = sand.u32 %s93, 1
        %s241 = scalar_lea.sflag [#allocation6], %s240
        %s242 = sand.u32 %s93, 1
        %s243 = smul.addr %s242, 8
        %s244 = scalar_lea.vmem [#allocation7], %s243
        // Predicated region
        $region41: #{tpu_custom_call.1} parent=27 // pred_check
          %p245 = pneg %p103
        $region42: #{tpu_custom_call.1} parent=27 // pred_check_branch
          %247 = sbr.rel (%p245) target = $region44
        $region43: #{tpu_custom_call.1} parent=27 // pred_region
          %s249 = ssub.s32 128, 128
          %250 = vsyncadd %s241, %s249
          %s251 = smul.addr %s24, 128
          %s252 = scalar_lea.hbm %s2, %s251
          %s254 = sshll.u32 %s244, 4
          %s255 = int_to_ptr.vmem [resolvable:$true] %s254
          %257 = dma.vmem_to_hbm [thread:$0]  %s255, 128, %s252, %s241
        $region44: #{tpu_custom_call.1} parent=27 // pred_fallthru
          _
      $region28: #{tpu_custom_call.1} parent=5 // pred_fallthru
        _
      %p258 = scmp.le.s32.totalorder 2, %s15
      // Predicated region
      $region45: #{tpu_custom_call.1} parent=5 // pred_check
        %p259 = pneg %p258
      $region46: #{tpu_custom_call.1} parent=5 // pred_check_branch
        %261 = sbr.rel (%p259) target = $region48
      $region47: #{tpu_custom_call.1} parent=5 // pred_region
        %s262 = ssub.s32 %s15, 2
        // Predicated region
        $region49: #{tpu_custom_call.1} parent=47 // pred_check
          %p263 = pneg %p109
        $region50: #{tpu_custom_call.1} parent=47 // pred_check_branch
          %265 = sbr.rel (%p263) target = $region52
        $region51: #{tpu_custom_call.1} parent=47 // pred_region
          %s266 = sand.u32 %s94, 1
          %s267 = scalar_lea.sflag [#allocation6], %s266
          %s268 = sand.u32 %s94, 1
          %s269 = smul.addr %s268, 8
          %s270 = scalar_lea.vmem [#allocation7], %s269
          %271 = dma.done %s267, 128
        $region52: #{tpu_custom_call.1} parent=47 // pred_fallthru
          _
      $region48: #{tpu_custom_call.1} parent=5 // pred_fallthru
        _
    $region6: #{tpu_custom_call.1} parent=1 // loop_footer
      %s19 = sadd.s32 1, %s15
    $region7: #{tpu_custom_call.1} parent=1 // loop_footer_branch
      %14 = sbr.rel target = $region3
    $region8: #{tpu_custom_call.1} parent=1 // loop_exit
      _
    %272 = vsyncpa [#allocation5], 1
    %s273 = scalar_lea.sflag [#allocation5], 1
    %274 = vsyncpa %s273, 1
    %275 = vsyncpa [#allocation6], 1
    %s276 = scalar_lea.sflag [#allocation6], 1
    %277 = vsyncpa %s276, 1

</llo_original>
